<compile_context>
chip_gen: v6e
topology: v6e:2x2x1
jax: 0.10.0
libtpu: 0.0.40
codegen_flags: <defaults>
</compile_context>

<pallas_src>
import functools

import jax
import jax.numpy as jnp
from jax.experimental import pallas as pl
from jax.experimental.pallas import tpu as pltpu

LANE = 128          # lane width / feature padding granularity
ROW_PAD = 256       # row padding granularity (min tile)
AGG_TM_MAX = 512    # aggregation row tile (mem-bound sweet spot per review)
AGG_TK_MAX = 1024   # aggregation k tile
LIN_TM_MAX = 2048   # projection/linear row tile (amortize per-step overhead)


# ----------------------------------------------------------------------------
# small helpers
# ----------------------------------------------------------------------------
def _round_up(x, m):
    return ((x + m - 1) // m) * m


def _pad2d(x, rows, cols):
    r, c = x.shape
    return jnp.pad(x, ((0, rows - r), (0, cols - c)))


def _pad1d(x, n, value=0.0):
    return jnp.pad(x, (0, n - x.shape[0]), constant_values=value)


def _pick_tile(n_pad, max_tile, min_tile=ROW_PAD, prefer_multi=True):
    """Largest multiple of min_tile (<= max_tile) dividing n_pad; prefer >=2 tiles."""
    t = min(max_tile, n_pad)
    t = max((t // min_tile) * min_tile, min_tile)
    while t > min_tile and (n_pad % t != 0 or (prefer_multi and n_pad // t < 2)):
        t -= min_tile
    return t


def _agg_vmem_budget(n_pad, tm, tk, d, dn, residual, hw_resident):
    b = 2 * tm * tk * 2                                   # A_hat tiles (bf16, x2 buf)
    b += (n_pad * d * 2) if hw_resident else (2 * tk * d * 2)   # HW
    if residual:
        b += 2 * tm * d * 2                               # residual input tiles
    b += 2 * (2 * d * 4)                                  # scale / shift
    b += 2 * d * dn * 2 + 2 * dn * 4                      # W_next, b_next
    b += 2 * tm * d * 2 + 2 * tm * dn * 4                 # outputs (act bf16, proj <=f32)
    b += tm * d * 4                                       # f32 accumulator scratch
    return b


# ----------------------------------------------------------------------------
# Pallas kernels
# ----------------------------------------------------------------------------
def _linear_kernel(x_ref, w_ref, b_ref, o_ref):
    # o = x @ w + b   (bf16 operands, f32 accumulate, epilogue in f32)
    acc = jnp.dot(x_ref[...], w_ref[...], preferred_element_type=jnp.float32)
    o_ref[...] = (acc + b_ref[...]).astype(o_ref.dtype)


def linear_pallas(x, w_t, b, out_dtype, tm):
    """x: [N, Din] bf16, w_t: [Din, Dout] bf16, b: [1, Dout] f32 -> [N, Dout]."""
    N, Din = x.shape
    Dout = w_t.shape[1]
    assert N % tm == 0, (N, tm)
    return pl.pallas_call(
        _linear_kernel,
        out_shape=jax.ShapeDtypeStruct((N, Dout), out_dtype),
        grid=(N // tm,),
        in_specs=[
            pl.BlockSpec((tm, Din), lambda i: (i, 0)),
            pl.BlockSpec((Din, Dout), lambda i: (0, 0)),   # W resident
            pl.BlockSpec((1, Dout), lambda i: (0, 0)),
        ],
        out_specs=pl.BlockSpec((tm, Dout), lambda i: (i, 0)),
        compiler_params=pltpu.CompilerParams(
            dimension_semantics=("parallel",)),
    )(x, w_t, b)


def _matmul_kernel(x_ref, w_ref, o_ref):
    o_ref[...] = jnp.dot(
        x_ref[...], w_ref[...],
        preferred_element_type=jnp.float32).astype(o_ref.dtype)


def matmul_pallas(x, w_t, out_dtype, tm):
    """Row-tiled no-bias matmul: x [N, Din] bf16 @ w_t [Din, Dout] bf16."""
    N, Din = x.shape
    Dout = w_t.shape[1]
    assert N % tm == 0, (N, tm)
    return pl.pallas_call(
        _matmul_kernel,
        out_shape=jax.ShapeDtypeStruct((N, Dout), out_dtype),
        grid=(N // tm,),
        in_specs=[
            pl.BlockSpec((tm, Din), lambda i: (i, 0)),
            pl.BlockSpec((Din, Dout), lambda i: (0, 0)),
        ],
        out_specs=pl.BlockSpec((tm, Dout), lambda i: (i, 0)),
        compiler_params=pltpu.CompilerParams(
            dimension_semantics=("parallel",)),
    )(x, w_t)


def _gcn_agg_fused_kernel(*refs, residual, hw_resident, tk):
    # acc = sum_k A_hat[i, k] @ HW[k]               (bf16 x bf16 -> f32 VMEM acc)
    # last k step: BN(+folded bias) -> ReLU -> (+residual) -> store act (bf16)
    #              AND next-layer projection  proj = act_bf16 @ W_next + b_next
    if residual:
        (a_ref, hw_ref, hin_ref, scale_ref, shift_ref,
         wn_ref, bn_ref, act_ref, hwn_ref, acc_ref) = refs
    else:
        (a_ref, hw_ref, scale_ref, shift_ref,
         wn_ref, bn_ref, act_ref, hwn_ref, acc_ref) = refs
        hin_ref = None

    k = pl.program_id(1)

    @pl.when(k == 0)
    def _():
        acc_ref[...] = jnp.zeros_like(acc_ref)

    if hw_resident:
        start = pl.multiple_of(k * tk, tk)
        hw_blk = hw_ref[pl.ds(start, tk), :]        # VMEM-resident HW, aligned slice
    else:
        hw_blk = hw_ref[...]                        # streamed (tk, D) block

    acc_ref[...] += jnp.dot(a_ref[...], hw_blk,
                            preferred_element_type=jnp.float32)

    @pl.when(k == pl.num_programs(1) - 1)
    def _():
        bn = acc_ref[...] * scale_ref[...] + shift_ref[...]   # conv bias folded in
        act = jnp.maximum(bn, jnp.float32(0.0))
        if residual:
            act = act + hin_ref[...].astype(jnp.float32)
        act_bf = act.astype(jnp.bfloat16)
        act_ref[...] = act_bf.astype(act_ref.dtype)
        proj = jnp.dot(act_bf, wn_ref[...],
                       preferred_element_type=jnp.float32) + bn_ref[...]
        hwn_ref[...] = proj.astype(hwn_ref.dtype)


def gcn_agg_fused_pallas(a_hat, hw, h_in, scale, shift, w_next, b_next, *,
                         residual, tm, tk,
                         act_dtype=jnp.bfloat16, proj_dtype=jnp.bfloat16):
    """One fused GCN layer step.

    a_hat: [Np, Np] bf16   hw: [Np, D] bf16   h_in: [Np, D] bf16 (residual)
    scale/shift: [1, D] f32   w_next: [D, Dn] bf16   b_next: [1, Dn] f32
    Returns (act [Np, D] act_dtype, hw_next [Np, Dn] proj_dtype).
    """
    n_pad = a_hat.shape[0]
    d = hw.shape[1]
    dn = w_next.shape[1]
    assert n_pad % tm == 0 and n_pad % tk == 0, (n_pad, tm, tk)

    # Keep HW resident in VMEM when it fits a conservative (v7x-safe) budget,
    # otherwise stream it along the k axis.
    hw_resident = _agg_vmem_budget(n_pad, tm, tk, d, dn,
                                   residual, True) <= (40 << 20)
    budget = _agg_vmem_budget(n_pad, tm, tk, d, dn, residual, hw_resident)
    vmem_limit = int(min(max(budget + (4 << 20), 32 << 20), 48 << 20))

    kernel = functools.partial(_gcn_agg_fused_kernel, residual=residual,
                               hw_resident=hw_resident, tk=tk)

    in_specs = [pl.BlockSpec((tm, tk), lambda i, k: (i, k))]      # A_hat tile
    args = [a_hat]
    if hw_resident:
        in_specs.append(pl.BlockSpec((n_pad, d), lambda i, k: (0, 0)))  # resident HW
    else:
        in_specs.append(pl.BlockSpec((tk, d), lambda i, k: (k, 0)))     # streamed HW
    args.append(hw)
    if residual:
        in_specs.append(pl.BlockSpec((tm, d), lambda i, k: (i, 0)))     # residual in
        args.append(h_in)
    in_specs += [
        pl.BlockSpec((1, d), lambda i, k: (0, 0)),     # BN scale
        pl.BlockSpec((1, d), lambda i, k: (0, 0)),     # BN shift (bias folded)
        pl.BlockSpec((d, dn), lambda i, k: (0, 0)),    # next-layer weight (resident)
        pl.BlockSpec((1, dn), lambda i, k: (0, 0)),    # next-layer bias
    ]
    args += [scale, shift, w_next, b_next]

    out_shape = (jax.ShapeDtypeStruct((n_pad, d), act_dtype),
                 jax.ShapeDtypeStruct((n_pad, dn), proj_dtype))
    out_specs = (pl.BlockSpec((tm, d), lambda i, k: (i, 0)),
                 pl.BlockSpec((tm, dn), lambda i, k: (i, 0)))

    return pl.pallas_call(
        kernel,
        out_shape=out_shape,
        grid=(n_pad // tm, n_pad // tk),          # rows parallel, k reduction last
        in_specs=in_specs,
        out_specs=out_specs,
        scratch_shapes=[pltpu.VMEM((tm, d), jnp.float32)],
        compiler_params=pltpu.CompilerParams(
            dimension_semantics=("parallel", "arbitrary"),
            vmem_limit_bytes=vmem_limit),
    )(*args)


# ----------------------------------------------------------------------------
# Glue: dense normalized adjacency (PyG gcn_norm, improved=False)
# ----------------------------------------------------------------------------
def build_normalized_adjacency(edge_index, num_nodes):
    src = edge_index[0]
    dst = edge_index[1]
    A = jnp.zeros((num_nodes, num_nodes), jnp.float32)
    A = A.at[dst, src].add(1.0)                       # flow: source -> target
    # add_remaining_self_loops: only add a self loop where none exists
    diag = jnp.diagonal(A)
    A = A + jnp.diag(jnp.where(diag > 0.0, 0.0, 1.0))
    deg = jnp.sum(A, axis=1)
    dinv = jnp.where(deg > 0, jax.lax.rsqrt(deg), 0.0)
    return dinv[:, None] * A * dinv[None, :]          # D^-1/2 A D^-1/2


def prepare_adjacency(edge_index, num_nodes, n_pad):
    """Inference-constant: build once, pad to tiles, cast bf16."""
    a = build_normalized_adjacency(edge_index, num_nodes)
    return _pad2d(a, n_pad, n_pad).astype(jnp.bfloat16)


# ----------------------------------------------------------------------------
# Parameters (deterministic init) and forward
# ----------------------------------------------------------------------------
def init_params(key, in_dim, hidden_dim, n_classes, n_layers):
    params = {}
    keys = jax.random.split(key, 2 + 2 * n_layers + 2)
    k = iter(keys)

    def glorot(rng, shape):
        fan_in, fan_out = shape[1], shape[0]
        lim = jnp.sqrt(6.0 / (fan_in + fan_out))
        return jax.random.uniform(rng, shape, jnp.float32, -lim, lim)

    params["emb_w"] = glorot(next(k), (hidden_dim, in_dim))
    params["emb_b"] = 0.01 * jax.random.normal(next(k), (hidden_dim,), jnp.float32)

    params["gcn_w"], params["gcn_b"] = [], []
    params["bn_scale"], params["bn_shift"] = [], []
    eps = 1e-5
    for _ in range(n_layers):
        params["gcn_w"].append(glorot(next(k), (hidden_dim, hidden_dim)))
        params["gcn_b"].append(
            0.01 * jax.random.normal(next(k), (hidden_dim,), jnp.float32))
        # BatchNorm1d eval: y = (x - rm)/sqrt(rv+eps)*gamma + beta ; rm=0, rv=1.
        # TODO(synk): fold real trained running stats here for a checkpoint.
        gamma = jnp.ones((hidden_dim,), jnp.float32)
        beta = jnp.zeros((hidden_dim,), jnp.float32)
        rm = jnp.zeros((hidden_dim,), jnp.float32)
        rv = jnp.ones((hidden_dim,), jnp.float32)
        scale = gamma / jnp.sqrt(rv + eps)
        shift = beta - rm * scale
        params["bn_scale"].append(scale)
        params["bn_shift"].append(shift)

    params["mlp_w"] = glorot(next(k), (n_classes, hidden_dim))
    params["mlp_b"] = 0.01 * jax.random.normal(next(k), (n_classes,), jnp.float32)
    return params


def gcn_net_forward(params, h, a_hat_padded, e=None, h_pos_enc=None,
                    *, n_layers, residual=True, batch_norm=True):
    """Forward pass. a_hat_padded: precomputed [n_pad, n_pad] bf16 adjacency."""
    # e (edge features) unused by GCNConv; pos_enc disabled in this config.
    # TODO(synk): pos_enc branch (embedding_pos_enc) not exercised (pos_enc=False).
    del e, h_pos_enc
    N, in_dim = h.shape
    hidden = params["emb_w"].shape[0]
    n_classes = params["mlp_w"].shape[0]

    n_pad = a_hat_padded.shape[0]
    in_pad = _round_up(in_dim, LANE)
    hid_pad = _round_up(hidden, LANE)
    cls_pad = _round_up(n_classes, LANE)

    # adaptive tiles (>=2 row tiles when possible -> both v7x TCs get work)
    tm_agg = _pick_tile(n_pad, AGG_TM_MAX, prefer_multi=True)
    tk_agg = _pick_tile(n_pad, AGG_TK_MAX, prefer_multi=False)
    tm_lin = _pick_tile(n_pad, LIN_TM_MAX, prefer_multi=True)

    # ----- embedding_h (in_feat_dropout is identity in eval) -----------------
    x = _pad2d(h, n_pad, in_pad).astype(jnp.bfloat16)
    emb_wt = _pad2d(params["emb_w"].T, in_pad, hid_pad).astype(jnp.bfloat16)
    emb_b = _pad1d(params["emb_b"], hid_pad)[None, :]
    hcur = linear_pallas(x, emb_wt, emb_b, out_dtype=jnp.bfloat16, tm=tm_lin)

    if n_layers == 0:
        mlp_wt = _pad2d(params["mlp_w"].T, hid_pad, cls_pad).astype(jnp.bfloat16)
        mlp_b = _pad1d(params["mlp_b"], cls_pad)[None, :]
        out = linear_pallas(hcur, mlp_wt, mlp_b, out_dtype=jnp.float32, tm=tm_lin)
        return out[:N, :n_classes]

    # first layer's HW = H @ W0^T (computed once; later layers come fused)
    w0_t = _pad2d(params["gcn_w"][0].T, hid_pad, hid_pad).astype(jnp.bfloat16)
    hw = matmul_pallas(hcur, w0_t, out_dtype=jnp.bfloat16, tm=tm_lin)

    # ----- GCN layers (aggregation + fused next projection) ------------------
    for i in range(n_layers):
        if batch_norm:
            scale = _pad1d(params["bn_scale"][i], hid_pad, value=1.0)
            shift = _pad1d(params["bn_shift"][i], hid_pad)
        else:
            scale = jnp.ones((hid_pad,), jnp.float32)
            shift = jnp.zeros((hid_pad,), jnp.float32)
        bias = _pad1d(params["gcn_b"][i], hid_pad)
        # fold conv bias into BN shift: (x + b)*s + t == x*s + (b*s + t)
        shift = (bias * scale + shift)[None, :]
        scale = scale[None, :]

        if i + 1 < n_layers:
            w_next = _pad2d(params["gcn_w"][i + 1].T, hid_pad, hid_pad)
            b_next = jnp.zeros((1, hid_pad), jnp.float32)   # next conv bias folded later
            proj_dtype = jnp.bfloat16
        else:
            w_next = _pad2d(params["mlp_w"].T, hid_pad, cls_pad)
            b_next = _pad1d(params["mlp_b"], cls_pad)[None, :]
            proj_dtype = jnp.float32
        w_next = w_next.astype(jnp.bfloat16)

        # OUT = relu(BN(A_hat @ HW)) (+ H) ; HW_next = OUT_bf16 @ W_next + b_next
        hcur, hw = gcn_agg_fused_pallas(
            a_hat_padded, hw, hcur, scale, shift, w_next, b_next,
            residual=residual, tm=tm_agg, tk=tk_agg,
            act_dtype=jnp.bfloat16, proj_dtype=proj_dtype)
        # F.dropout(training=False) -> identity

    # last fused projection is the MLP_layer output (already + bias, f32)
    return hw[:N, :n_classes]


# ----------------------------------------------------------------------------
# Pure-JAX reference (mirrors the bf16 operand casts; f32 accumulation)
# ----------------------------------------------------------------------------
def reference_forward(params, h, edge_index, *, n_layers, residual, batch_norm):
    N = h.shape[0]
    a = build_normalized_adjacency(edge_index, N).astype(jnp.bfloat16)
    hcur = (jnp.dot(h.astype(jnp.bfloat16),
                    params["emb_w"].T.astype(jnp.bfloat16),
                    preferred_element_type=jnp.float32)
            + params["emb_b"][None, :]).astype(jnp.bfloat16)
    for i in range(n_layers):
        hw = jnp.dot(hcur, params["gcn_w"][i].T.astype(jnp.bfloat16),
                     preferred_element_type=jnp.float32).astype(jnp.bfloat16)
        agg = (jnp.dot(a, hw, preferred_element_type=jnp.float32)
               + params["gcn_b"][i][None, :])
        if batch_norm:
            agg = agg * params["bn_scale"][i][None, :] + params["bn_shift"][i][None, :]
        act = jnp.maximum(agg, 0.0)
        if residual:
            act = hcur.astype(jnp.float32) + act
        hcur = act.astype(jnp.bfloat16)
    return (jnp.dot(hcur, params["mlp_w"].T.astype(jnp.bfloat16),
                    preferred_element_type=jnp.float32)
            + params["mlp_b"][None, :])


# ----------------------------------------------------------------------------
# Main
# ----------------------------------------------------------------------------
if __name__ == "__main__":
    # Small synthetic graph; N chosen so the tiled grid has >1 row and >1 k step.
    N_NODES = 300
    N_EDGES = 1200
    IN_DIM = 16
    HIDDEN_DIM = 32
    N_CLASSES = 8
    N_LAYERS = 2

    key = jax.random.PRNGKey(0)
    k_feat, k_src, k_dst, k_params = jax.random.split(key, 4)

    h = jax.random.normal(k_feat, (N_NODES, IN_DIM), jnp.float32)
    src = jax.random.randint(k_src, (N_EDGES,), 0, N_NODES, jnp.int32)
    dst = jax.random.randint(k_dst, (N_EDGES,), 0, N_NODES, jnp.int32)
    edge_index = jnp.stack([src, dst], axis=0)          # [2, E]
    e = jnp.ones((N_EDGES,), jnp.float32)               # unused by GCNConv

    params = init_params(k_params, IN_DIM, HIDDEN_DIM, N_CLASSES, N_LAYERS)

    # inference-constant: normalized adjacency built once, padded + bf16
    n_pad = _round_up(N_NODES, ROW_PAD)
    a_hat = prepare_adjacency(edge_index, N_NODES, n_pad)

    out = gcn_net_forward(params, h, a_hat, e,
                          n_layers=N_LAYERS, residual=True, batch_norm=True)
    out = jax.block_until_ready(out)

    assert out.shape == (N_NODES, N_CLASSES), out.shape
    assert bool(jnp.all(jnp.isfinite(out)))

    ref = reference_forward(params, h, edge_index,
                            n_layers=N_LAYERS, residual=True, batch_norm=True)
    max_err = float(jnp.max(jnp.abs(out - ref)))
    assert max_err < 5e-2, f"max abs error vs reference: {max_err}"

    print("KERNEL_OK")
</pallas_src>

<mosaic_0001>
module attributes {stable_mosaic.version = 11 : i64} {
  func.func @_linear_kernel(%arg0: i32, %arg1: memref<256x128xbf16, #tpu.memory_space<vmem>>, %arg2: memref<128x128xbf16, #tpu.memory_space<vmem>>, %arg3: memref<1x128xf32, #tpu.memory_space<vmem>>, %arg4: memref<256x128xbf16, #tpu.memory_space<vmem>>) attributes {dimension_semantics = [#tpu.dimension_semantics<parallel>], iteration_bounds = array<i64: 2>, scalar_prefetch = 0 : i64, scratch_operands = 0 : i64, tpu.core_type = #tpu.core_type<tc>, window_params = [{transform_indices = @transform_0, window_bounds = array<i64: 256, 128>}, {pipeline_mode = #tpu.pipeline_mode<synchronous>, transform_indices = @transform_1, window_bounds = array<i64: 128, 128>}, {pipeline_mode = #tpu.pipeline_mode<synchronous>, transform_indices = @transform_2, window_bounds = array<i64: 1, 128>}, {transform_indices = @transform_3, window_bounds = array<i64: 256, 128>}]} {
    %c0 = arith.constant 0 : index
    %c0_0 = arith.constant 0 : index
    %0 = vector.load %arg1[%c0, %c0_0] : memref<256x128xbf16, #tpu.memory_space<vmem>>, vector<256x128xbf16>
    %c0_1 = arith.constant 0 : index
    %c0_2 = arith.constant 0 : index
    %1 = vector.load %arg2[%c0_1, %c0_2] : memref<128x128xbf16, #tpu.memory_space<vmem>>, vector<128x128xbf16>
    %cst = arith.constant dense<0.000000e+00> : vector<256x128xf32>
    %2 = tpu.matmul %0, %1, %cst {dimension_numbers = #tpu.dot_dimension_numbers<[1], [0], [0], [1], [0, 0, 1, 1], [], []>} : vector<256x128xbf16>, vector<128x128xbf16>, vector<256x128xf32> -> vector<256x128xf32>
    %c0_3 = arith.constant 0 : index
    %c0_4 = arith.constant 0 : index
    %3 = vector.load %arg3[%c0_3, %c0_4] : memref<1x128xf32, #tpu.memory_space<vmem>>, vector<1x128xf32>
    %4 = vector.broadcast %3 : vector<1x128xf32> to vector<256x128xf32>
    %5 = arith.addf %2, %4 : vector<256x128xf32>
    %6 = arith.truncf %5 : vector<256x128xf32> to vector<256x128xbf16>
    %c0_5 = arith.constant 0 : index
    %c0_6 = arith.constant 0 : index
    %7 = vector.load %arg4[%c0_5, %c0_6] : memref<256x128xbf16, #tpu.memory_space<vmem>>, vector<256x128xbf16>
    tpu.vector_store %arg4[%c0_5, %c0_6], %6 {strides = array<i32>} : memref<256x128xbf16, #tpu.memory_space<vmem>>, vector<256x128xbf16>,
    return
  }
  func.func @transform_0(%arg0: i32) -> (i32, i32) {
    %c0_i32 = arith.constant 0 : i32
    %c0_i32_0 = arith.constant 0 : i32
    return %arg0, %c0_i32 : i32, i32
  }
  func.func @transform_1(%arg0: i32) -> (i32, i32) {
    %c0_i32 = arith.constant 0 : i32
    %c0_i32_0 = arith.constant 0 : i32
    %c0_i32_1 = arith.constant 0 : i32
    return %c0_i32, %c0_i32_0 : i32, i32
  }
  func.func @transform_2(%arg0: i32) -> (i32, i32) {
    %c0_i32 = arith.constant 0 : i32
    %c0_i32_0 = arith.constant 0 : i32
    %c0_i32_1 = arith.constant 0 : i32
    return %c0_i32, %c0_i32_0 : i32, i32
  }
  func.func @transform_3(%arg0: i32) -> (i32, i32) {
    %c0_i32 = arith.constant 0 : i32
    %c0_i32_0 = arith.constant 0 : i32
    return %arg0, %c0_i32 : i32, i32
  }
}

</mosaic_0001>

<llo_original>
// kernel: tpu_custom_call.1
$region0: #{tpu_custom_call.1}
  #allocation0 [shape = 'u32[]', space=smem, size = 0x4, offset = 0x4, fixed_abs, tag = 'smem constant byte address 0x4 - core index']
  #allocation1 [shape = 'u32[144,128]{1,0:T(1,128)}', space=vmem, size = 0x12000, scoped, tag = 'internal scratch']
  %s0 = inlined_call_operand.hbm [shape: bf16[512,128], index: 0, kind: input, shape index: {}]
  %s1 = inlined_call_operand.hbm [shape: bf16[128,128], index: 1, kind: input, shape index: {}]
  %s2 = inlined_call_operand.vmem [shape: f32[1,128], index: 2, kind: input, shape index: {}]
  %s3 = inlined_call_operand.hbm [shape: bf16[512,128], index: 3, kind: output, shape index: {}]
  %s4 = sld [smem:[#allocation0]]
  $region53: #{tpu_custom_call.1} parent=0
    _
  %s6 = ssub.s32 1, %s4
  %s7 = scalar_select 0, %s6, %s4
  $region1: #{tpu_custom_call.1} parent=0
    #allocation2 [shape = 'u8[131072]{0}', space=vmem, size = 0x20000, scoped, tag = 'input window, operand 0']
    #allocation3 [shape = 's32[2]{0}', space=sflag, size = 0x8, scoped, tag = 'scoped memory for tpu_custom_call.1']
    #allocation4 [shape = 's32[2]{0}', space=sflag, size = 0x8, scoped, tag = 'scoped memory for tpu_custom_call.1']
    #allocation5 [shape = 'u8[32768]{0}', space=vmem, size = 0x8000, scoped, tag = 'input window, operand 1, single buffered']
    #allocation6 [shape = 's32[1]{0}', space=sflag, size = 0x4, scoped, tag = 'scoped memory for tpu_custom_call.1']
    #allocation7 [shape = 'u8[131072]{0}', space=vmem, size = 0x20000, scoped, tag = 'output window, operand 0']
    %8 = vsyncpa [#allocation3], 0
    %s9 = scalar_lea.sflag [#allocation3], 1
    %10 = vsyncpa %s9, 0
    %11 = vsyncpa [#allocation6], 0
    %12 = vsyncpa [#allocation4], 0
    %s13 = scalar_lea.sflag [#allocation4], 1
    %14 = vsyncpa %s13, 0
    loop: start=0, step=1, limit=4
    $region2: #{tpu_custom_call.1} parent=1 // loop_pre_header
      _
    $region3: #{tpu_custom_call.1} parent=1 // loop_header
      %s16 = sphi 0, %s20
      %p17 = scmp.ge.s32.totalorder %s16, 4
      %s26 = sphi 0, %s28
      %s29 = sphi 0, %s26
      %s30 = sphi 0, %s29
      %s46 = sphi 0, %s30
      %s50 = sphi 0, %s50
      %s52 = sphi 0, %s50
      %s53 = sphi 0, %s52
      %s67 = sphi 0, %s53
      %s71 = sphi 0, %s71
      %s73 = sphi 0, %s71
      %s74 = sphi 0, %s73
      %s88 = sphi 0, %s74
      %s94 = sphi 0, %s96
      %s97 = sphi 0, %s94
      %s98 = sphi 0, %s97
      %s114 = sphi 0, %s98
    $region4: #{tpu_custom_call.1} parent=1 // loop_header_branch
      %19 = sbr.rel (%p17) target = $region8
    $region5: #{tpu_custom_call.1} parent=1 // loop_body
      %s21 = ssub.s32 %s16, 1
      %s22 = ssub.s32 %s16, 2
      %s23 = sadd.s32 %s16, 1
      %s24 = ssub.s32 %s16, %s23
      %p25 = scmp.eq.s32.totalorder %s24, 0
      %s27 = sadd.s32 %s26, 1
      %s28 = scalar_select %p25, %s26, %s27
      %p31 = pneg %p25
      %p32 = scmp.eq.s32.totalorder %s16, 1
      %p33 = por %p31, %p32
      %p34 = scmp.ne.s32.totalorder %s26, %s29
      %p35 = scmp.eq.s32.totalorder %s16, 0
      %p36 = por %p34, %p35
      %p37 = scmp.ne.s32.totalorder %s26, %s29
      %p38 = scmp.eq.s32.totalorder %s21, 1
      %p39 = por %p37, %p38
      %p40 = scmp.ne.s32.totalorder %s29, %s30
      %p41 = scmp.eq.s32.totalorder %s21, 0
      %p42 = por %p40, %p41
      %p43 = scmp.ne.s32.totalorder %s29, %s30
      %p44 = scmp.eq.s32.totalorder %s22, 1
      %p45 = por %p43, %p44
      %p47 = scmp.ne.s32.totalorder %s30, %s46
      %p48 = scmp.eq.s32.totalorder %s22, 0
      %p49 = por %p47, %p48
      %s51 = sadd.s32 %s50, 1
      %p54 = scmp.eq.s32.totalorder %s16, 1
      %p55 = scmp.ne.s32.totalorder %s50, %s52
      %p56 = scmp.eq.s32.totalorder %s16, 0
      %p57 = por %p55, %p56
      %p58 = scmp.ne.s32.totalorder %s50, %s52
      %p59 = scmp.eq.s32.totalorder %s21, 1
      %p60 = por %p58, %p59
      %p61 = scmp.ne.s32.totalorder %s52, %s53
      %p62 = scmp.eq.s32.totalorder %s21, 0
      %p63 = por %p61, %p62
      %p64 = scmp.ne.s32.totalorder %s52, %s53
      %p65 = scmp.eq.s32.totalorder %s22, 1
      %p66 = por %p64, %p65
      %p68 = scmp.ne.s32.totalorder %s53, %s67
      %p69 = scmp.eq.s32.totalorder %s22, 0
      %p70 = por %p68, %p69
      %s72 = sadd.s32 %s71, 1
      %p75 = scmp.eq.s32.totalorder %s16, 1
      %p76 = scmp.ne.s32.totalorder %s71, %s73
      %p77 = scmp.eq.s32.totalorder %s16, 0
      %p78 = por %p76, %p77
      %p79 = scmp.ne.s32.totalorder %s71, %s73
      %p80 = scmp.eq.s32.totalorder %s21, 1
      %p81 = por %p79, %p80
      %p82 = scmp.ne.s32.totalorder %s73, %s74
      %p83 = scmp.eq.s32.totalorder %s21, 0
      %p84 = por %p82, %p83
      %p85 = scmp.ne.s32.totalorder %s73, %s74
      %p86 = scmp.eq.s32.totalorder %s22, 1
      %p87 = por %p85, %p86
      %p89 = scmp.ne.s32.totalorder %s74, %s88
      %p90 = scmp.eq.s32.totalorder %s22, 0
      %p91 = por %p89, %p90
      %s92 = ssub.s32 %s16, %s23
      %p93 = scmp.eq.s32.totalorder %s92, 0
      %s95 = sadd.s32 %s94, 1
      %s96 = scalar_select %p93, %s94, %s95
      %p99 = pneg %p93
      %p100 = scmp.eq.s32.totalorder %s16, 1
      %p101 = por %p99, %p100
      %p102 = scmp.ne.s32.totalorder %s94, %s97
      %p103 = scmp.eq.s32.totalorder %s16, 0
      %p104 = por %p102, %p103
      %p105 = scmp.ne.s32.totalorder %s94, %s97
      %p106 = scmp.eq.s32.totalorder %s21, 1
      %p107 = por %p105, %p106
      %p108 = scmp.ne.s32.totalorder %s97, %s98
      %p109 = scmp.eq.s32.totalorder %s21, 0
      %p110 = por %p108, %p109
      %p111 = scmp.ne.s32.totalorder %s97, %s98
      %p112 = scmp.eq.s32.totalorder %s22, 1
      %p113 = por %p111, %p112
      %p115 = scmp.ne.s32.totalorder %s98, %s114
      %p116 = scmp.eq.s32.totalorder %s22, 0
      %p117 = por %p115, %p116
      %p118 = scmp.le.s32.totalorder 1, %s16
      %p119 = scmp.lt.s32.totalorder %s16, 3
      %p120 = pnand %p118, %p119
      %p121 = pneg %p120
      // Predicated region
      $region9: #{tpu_custom_call.1} parent=5 // pred_check
        _
      $region10: #{tpu_custom_call.1} parent=5 // pred_check_branch
        %123 = sbr.rel (%p120) target = $region12
      $region11: #{tpu_custom_call.1} parent=5 // pred_region
        %s124 = ssub.s32 %s16, 1
        // Predicated region
        $region13: #{tpu_custom_call.1} parent=11 // pred_check
          %p125 = pneg %p63
        $region14: #{tpu_custom_call.1} parent=11 // pred_check_branch
          %127 = sbr.rel (%p125) target = $region16
        $region15: #{tpu_custom_call.1} parent=11 // pred_region
          %s129 = ssub.s32 1024, 1024
          %130 = vsyncadd [#allocation6], %s129
          %s131 = sshll.u32 [#allocation5], 4
          %s132 = int_to_ptr.vmem [resolvable:$true] %s131
          %137 = dma.hbm_to_vmem [thread:$0]  %s1, 1024, %s132, [#allocation6], 64, 64, 4
        $region16: #{tpu_custom_call.1} parent=11 // pred_fallthru
          _
        // Predicated region
        $region17: #{tpu_custom_call.1} parent=11 // pred_check
          %p138 = pneg %p84
        $region18: #{tpu_custom_call.1} parent=11 // pred_check_branch
          %140 = sbr.rel (%p138) target = $region20
        $region19: #{tpu_custom_call.1} parent=11 // pred_region
          _
        $region20: #{tpu_custom_call.1} parent=11 // pred_fallthru
          _
      $region12: #{tpu_custom_call.1} parent=5 // pred_fallthru
        _
      %p141 = scmp.lt.s32.totalorder %s16, 2
      // Predicated region
      $region21: #{tpu_custom_call.1} parent=5 // pred_check
        %p142 = pneg %p141
      $region22: #{tpu_custom_call.1} parent=5 // pred_check_branch
        %144 = sbr.rel (%p142) target = $region24
      $region23: #{tpu_custom_call.1} parent=5 // pred_region
        // Predicated region
        $region25: #{tpu_custom_call.1} parent=23 // pred_check
          %p145 = pneg %p36
        $region26: #{tpu_custom_call.1} parent=23 // pred_check_branch
          %147 = sbr.rel (%p145) target = $region28
        $region27: #{tpu_custom_call.1} parent=23 // pred_region
          %s148 = sand.u32 %s26, 1
          %s149 = scalar_lea.sflag [#allocation3], %s148
          %s150 = sand.u32 %s26, 1
          %s151 = smul.addr %s150, 128
          %s152 = scalar_lea.vmem [#allocation2], %s151
          %s153 = smul.u32 32, %s16
          %s155 = ssub.s32 2048, 2048
          %156 = vsyncadd %s149, %s155
          %s157 = smul.addr %s153, 64
          %s158 = scalar_lea.hbm %s0, %s157
          %s159 = sshll.u32 %s152, 4
          %s160 = int_to_ptr.vmem [resolvable:$true] %s159
          %165 = dma.hbm_to_vmem [thread:$0]  %s158, 2048, %s160, %s149, 64, 64, 4
        $region28: #{tpu_custom_call.1} parent=23 // pred_fallthru
          _
      $region24: #{tpu_custom_call.1} parent=5 // pred_fallthru
        _
      %p166 = scmp.le.s32.totalorder 1, %s16
      %p167 = scmp.lt.s32.totalorder %s16, 3
      %p168 = pnand %p166, %p167
      %p169 = pneg %p168
      // Predicated region
      $region29: #{tpu_custom_call.1} parent=5 // pred_check
        _
      $region30: #{tpu_custom_call.1} parent=5 // pred_check_branch
        %171 = sbr.rel (%p168) target = $region32
      $region31: #{tpu_custom_call.1} parent=5 // pred_region
        %s172 = ssub.s32 %s16, 1
        %s173 = sand.u32 %s29, 1
        %s174 = scalar_lea.sflag [#allocation3], %s173
        %s175 = sand.u32 %s29, 1
        %s176 = smul.addr %s175, 128
        %s177 = scalar_lea.vmem [#allocation2], %s176
        // Predicated region
        $region33: #{tpu_custom_call.1} parent=31 // pred_check
          %p178 = pneg %p42
        $region34: #{tpu_custom_call.1} parent=31 // pred_check_branch
          %180 = sbr.rel (%p178) target = $region36
        $region35: #{tpu_custom_call.1} parent=31 // pred_region
          %181 = dma.done %s174, 2048
        $region36: #{tpu_custom_call.1} parent=31 // pred_fallthru
          _
        // Predicated region
        $region37: #{tpu_custom_call.1} parent=31 // pred_check
          %p182 = pneg %p63
        $region38: #{tpu_custom_call.1} parent=31 // pred_check_branch
          %184 = sbr.rel (%p182) target = $region40
        $region39: #{tpu_custom_call.1} parent=31 // pred_region
          %185 = dma.done [#allocation6], 1024
        $region40: #{tpu_custom_call.1} parent=31 // pred_fallthru
          _
        %s186 = sand.u32 %s29, 1
        %s187 = scalar_lea.sflag [#allocation3], %s186
        %s188 = sand.u32 %s29, 1
        %s189 = smul.addr %s188, 128
        %s190 = scalar_lea.vmem [#allocation2], %s189
        %p191 = pneg %p42
        %p192 = pneg %p39
        %p193 = pneg %p63
        %p194 = pneg %p60
        %p195 = pneg %p84
        %p196 = pneg %p81
        %p197 = pneg %p110
        %p198 = pneg %p107
        %s199 = sand.u32 %s97, 1
        %s200 = scalar_lea.sflag [#allocation4], %s199
        %s201 = sand.u32 %s97, 1
        %s202 = smul.addr %s201, 128
        %s203 = scalar_lea.vmem [#allocation7], %s202
        %s204 = smul.u32 32, %s21
        %s205 = smul.u32 32, %s21
        %v207 = vld [vmem:[%s177] sm:$0xf]
        %v208 = vld [vmem:[%s177 + $0x4] sm:$0xf]
        %v209 = vld [vmem:[%s177 + $0x8] sm:$0xf]
        %v210 = vld [vmem:[%s177 + $0xc] sm:$0xf]
        %v211 = vld [vmem:[%s177 + $0x10] sm:$0xf]
        %v212 = vld [vmem:[%s177 + $0x14] sm:$0xf]
        %v213 = vld [vmem:[%s177 + $0x18] sm:$0xf]
        %v214 = vld [vmem:[%s177 + $0x1c] sm:$0xf]
        %v215 = vld [vmem:[%s177 + $0x20] sm:$0xf]
        %v216 = vld [vmem:[%s177 + $0x24] sm:$0xf]
        %v217 = vld [vmem:[%s177 + $0x28] sm:$0xf]
        %v218 = vld [vmem:[%s177 + $0x2c] sm:$0xf]
        %v219 = vld [vmem:[%s177 + $0x30] sm:$0xf]
        %v220 = vld [vmem:[%s177 + $0x34] sm:$0xf]
        %v221 = vld [vmem:[%s177 + $0x38] sm:$0xf]
        %v222 = vld [vmem:[%s177 + $0x3c] sm:$0xf]
        %v223 = vld [vmem:[%s177 + $0x40] sm:$0xf]
        %v224 = vld [vmem:[%s177 + $0x44] sm:$0xf]
        %v225 = vld [vmem:[%s177 + $0x48] sm:$0xf]
        %v226 = vld [vmem:[%s177 + $0x4c] sm:$0xf]
        %v227 = vld [vmem:[%s177 + $0x50] sm:$0xf]
        %v228 = vld [vmem:[%s177 + $0x54] sm:$0xf]
        %v229 = vld [vmem:[%s177 + $0x58] sm:$0xf]
        %v230 = vld [vmem:[%s177 + $0x5c] sm:$0xf]
        %v231 = vld [vmem:[%s177 + $0x60] sm:$0xf]
        %v232 = vld [vmem:[%s177 + $0x64] sm:$0xf]
        %v233 = vld [vmem:[%s177 + $0x68] sm:$0xf]
        %v234 = vld [vmem:[%s177 + $0x6c] sm:$0xf]
        %v235 = vld [vmem:[%s177 + $0x70] sm:$0xf]
        %v236 = vld [vmem:[%s177 + $0x74] sm:$0xf]
        %v237 = vld [vmem:[%s177 + $0x78] sm:$0xf]
        %v238 = vld [vmem:[%s177 + $0x7c] sm:$0xf]
        %v239 = vld [vmem:[#allocation5] sm:$0xf]
        %v240 = vld [vmem:[#allocation5 + $0x4] sm:$0xf]
        %v241 = vld [vmem:[#allocation5 + $0x8] sm:$0xf]
        %v242 = vld [vmem:[#allocation5 + $0xc] sm:$0xf]
        %v243 = vld [vmem:[#allocation5 + $0x10] sm:$0xf]
        %v244 = vld [vmem:[#allocation5 + $0x14] sm:$0xf]
        %v245 = vld [vmem:[#allocation5 + $0x18] sm:$0xf]
        %v246 = vld [vmem:[#allocation5 + $0x1c] sm:$0xf]
        %v247 = vld [vmem:[#allocation5 + $0x20] sm:$0xf]
        %v248 = vld [vmem:[#allocation5 + $0x24] sm:$0xf]
        %v249 = vld [vmem:[#allocation5 + $0x28] sm:$0xf]
        %v250 = vld [vmem:[#allocation5 + $0x2c] sm:$0xf]
        %v251 = vld [vmem:[#allocation5 + $0x30] sm:$0xf]
        %v252 = vld [vmem:[#allocation5 + $0x34] sm:$0xf]
        %v253 = vld [vmem:[#allocation5 + $0x38] sm:$0xf]
        %v254 = vld [vmem:[#allocation5 + $0x3c] sm:$0xf]
        %v255 = vld [vmem:[%s2] sm:$0x1]
        %v257 = vlaneseq
        %v258 = vshrl.u32 %v257, 7
        %v259 = vsub.s32 0, %v258
        %v260 = vrot.slane %v255, %v259
        %v294 = vunpack.c.l.b16 %v207
        %v295 = vunpack.c.l.b16 %v208
        %v296 = vunpack.c.l.b16 %v209
        %v297 = vunpack.c.l.b16 %v210
        %v298 = vunpack.c.l.b16 %v211
        %v299 = vunpack.c.l.b16 %v212
        %v300 = vunpack.c.l.b16 %v213
        %v301 = vunpack.c.l.b16 %v214
        %v302 = vunpack.c.l.b16 %v215
        %v303 = vunpack.c.l.b16 %v216
        %v304 = vunpack.c.l.b16 %v217
        %v305 = vunpack.c.l.b16 %v218
        %v306 = vunpack.c.l.b16 %v219
        %v307 = vunpack.c.l.b16 %v220
        %v308 = vunpack.c.l.b16 %v221
        %v309 = vunpack.c.l.b16 %v222
        %v310 = vunpack.c.l.b16 %v223
        %v311 = vunpack.c.l.b16 %v224
        %v312 = vunpack.c.l.b16 %v225
        %v313 = vunpack.c.l.b16 %v226
        %v314 = vunpack.c.l.b16 %v227
        %v315 = vunpack.c.l.b16 %v228
        %v316 = vunpack.c.l.b16 %v229
        %v317 = vunpack.c.l.b16 %v230
        %v318 = vunpack.c.l.b16 %v231
        %v319 = vunpack.c.l.b16 %v232
        %v320 = vunpack.c.l.b16 %v233
        %v321 = vunpack.c.l.b16 %v234
        %v322 = vunpack.c.l.b16 %v235
        %v323 = vunpack.c.l.b16 %v236
        %v324 = vunpack.c.l.b16 %v237
        %v325 = vunpack.c.l.b16 %v238
        %v326 = vpack.c.b16 %v295, %v294
        %v327 = vpack.c.b16 %v297, %v296
        %v328 = vpack.c.b16 %v299, %v298
        %v329 = vpack.c.b16 %v301, %v300
        %v330 = vpack.c.b16 %v303, %v302
        %v331 = vpack.c.b16 %v305, %v304
        %v332 = vpack.c.b16 %v307, %v306
        %v333 = vpack.c.b16 %v309, %v308
        %v334 = vpack.c.b16 %v311, %v310
        %v335 = vpack.c.b16 %v313, %v312
        %v336 = vpack.c.b16 %v315, %v314
        %v337 = vpack.c.b16 %v317, %v316
        %v338 = vpack.c.b16 %v319, %v318
        %v339 = vpack.c.b16 %v321, %v320
        %v340 = vpack.c.b16 %v323, %v322
        %v341 = vpack.c.b16 %v325, %v324
        %v374 = vunpack.c.l.b16 %v239
        %v375 = vunpack.c.l.b16 %v240
        %v376 = vunpack.c.l.b16 %v241
        %v377 = vunpack.c.l.b16 %v242
        %v378 = vunpack.c.l.b16 %v243
        %v379 = vunpack.c.l.b16 %v244
        %v380 = vunpack.c.l.b16 %v245
        %v381 = vunpack.c.l.b16 %v246
        %v382 = vunpack.c.l.b16 %v247
        %v383 = vunpack.c.l.b16 %v248
        %v384 = vunpack.c.l.b16 %v249
        %v385 = vunpack.c.l.b16 %v250
        %v386 = vunpack.c.l.b16 %v251
        %v387 = vunpack.c.l.b16 %v252
        %v388 = vunpack.c.l.b16 %v253
        %v389 = vunpack.c.l.b16 %v254
        %v390 = vpack.c.b16 %v375, %v374
        %v391 = vpack.c.b16 %v377, %v376
        %v392 = vpack.c.b16 %v379, %v378
        %v393 = vpack.c.b16 %v381, %v380
        %v394 = vpack.c.b16 %v383, %v382
        %v395 = vpack.c.b16 %v385, %v384
        %v396 = vpack.c.b16 %v387, %v386
        %v397 = vpack.c.b16 %v389, %v388
        %406 = vmatprep.subr.bf16.mxu0 0
        %407 = vmatpush1.bf16.msra.mxu0 %v397
        %408 = vmatprep.subr.bf16.mxu0 0
        %409 = vmatpush1.bf16.msra.mxu0 %v396
        %410 = vmatprep.subr.bf16.mxu0 0
        %411 = vmatpush1.bf16.msra.mxu0 %v395
        %412 = vmatprep.subr.bf16.mxu0 0
        %413 = vmatpush1.bf16.msra.mxu0 %v394
        %414 = vmatprep.subr.bf16.mxu0 0
        %415 = vmatpush1.bf16.msra.mxu0 %v393
        %416 = vmatprep.subr.bf16.mxu0 0
        %417 = vmatpush1.bf16.msra.mxu0 %v392
        %418 = vmatprep.subr.bf16.mxu0 0
        %419 = vmatpush1.bf16.msra.mxu0 %v391
        %420 = vmatprep.subr.bf16.mxu0 0
        %421 = vmatpush1.bf16.msra.mxu0 %v390
        %422 = vmatprep.subr.bf16.mxu0 0
        %423 = vmatpush2.bf16.msra.mxu0 0
        %424 = vmatprep.subr.bf16.mxu0 0
        %425 = vmatpush2.bf16.msra.mxu0 0
        %426 = vmatprep.subr.bf16.mxu0 0
        %427 = vmatpush2.bf16.msra.mxu0 0
        %428 = vmatprep.subr.bf16.mxu0 0
        %429 = vmatpush2.bf16.msra.mxu0 0
        %430 = vmatprep.subr.bf16.mxu0 0
        %431 = vmatpush2.bf16.msra.mxu0 0
        %432 = vmatprep.subr.bf16.mxu0 0
        %433 = vmatpush2.bf16.msra.mxu0 0
        %434 = vmatprep.subr.bf16.mxu0 0
        %435 = vmatpush2.bf16.msra.mxu0 0
        %436 = vmatprep.subr.bf16.mxu0 0
        %437 = vmatpush2.bf16.msra.mxu0 0
        %438 = vmatprep.mubr.bf16.mxu0 0
        %439 = vmatmul.mubr.bf16.gmra.mxu0 %v326
        %v440 = vpop.f32.mrf.mxu0
        %v441 = vadd.f32 %v260, %v440
        %v442 = vpop.f32.mrf.mxu0
        %v443 = vpop.f32.mrf.mxu0
        %v444 = vadd.f32 %v260, %v443
        %v445 = vpop.f32.mrf.mxu0
        %446 = vmatprep.mubr.bf16.mxu0 0
        %447 = vmatmul.mubr.bf16.gmra.mxu0 %v327
        %v448 = vpop.f32.mrf.mxu0
        %v449 = vadd.f32 %v260, %v448
        %v450 = vpop.f32.mrf.mxu0
        %v451 = vpop.f32.mrf.mxu0
        %v452 = vadd.f32 %v260, %v451
        %v453 = vpop.f32.mrf.mxu0
        %454 = vmatprep.mubr.bf16.mxu0 0
        %455 = vmatmul.mubr.bf16.gmra.mxu0 %v328
        %v456 = vpop.f32.mrf.mxu0
        %v457 = vadd.f32 %v260, %v456
        %v458 = vpop.f32.mrf.mxu0
        %v459 = vpop.f32.mrf.mxu0
        %v460 = vadd.f32 %v260, %v459
        %v461 = vpop.f32.mrf.mxu0
        %462 = vmatprep.mubr.bf16.mxu0 0
        %463 = vmatmul.mubr.bf16.gmra.mxu0 %v329
        %v464 = vpop.f32.mrf.mxu0
        %v465 = vadd.f32 %v260, %v464
        %v466 = vpop.f32.mrf.mxu0
        %v467 = vpop.f32.mrf.mxu0
        %v468 = vadd.f32 %v260, %v467
        %v469 = vpop.f32.mrf.mxu0
        %470 = vmatprep.mubr.bf16.mxu0 0
        %471 = vmatmul.mubr.bf16.gmra.mxu0 %v330
        %v472 = vpop.f32.mrf.mxu0
        %v473 = vadd.f32 %v260, %v472
        %v474 = vpop.f32.mrf.mxu0
        %v475 = vpop.f32.mrf.mxu0
        %v476 = vadd.f32 %v260, %v475
        %v477 = vpop.f32.mrf.mxu0
        %478 = vmatprep.mubr.bf16.mxu0 0
        %479 = vmatmul.mubr.bf16.gmra.mxu0 %v331
        %v480 = vpop.f32.mrf.mxu0
        %v481 = vadd.f32 %v260, %v480
        %v482 = vpop.f32.mrf.mxu0
        %v483 = vpop.f32.mrf.mxu0
        %v484 = vadd.f32 %v260, %v483
        %v485 = vpop.f32.mrf.mxu0
        %486 = vmatprep.mubr.bf16.mxu0 0
        %487 = vmatmul.mubr.bf16.gmra.mxu0 %v332
        %v488 = vpop.f32.mrf.mxu0
        %v489 = vadd.f32 %v260, %v488
        %v490 = vpop.f32.mrf.mxu0
        %v491 = vpop.f32.mrf.mxu0
        %v492 = vadd.f32 %v260, %v491
        %v493 = vpop.f32.mrf.mxu0
        %494 = vmatprep.mubr.bf16.mxu0 0
        %495 = vmatmul.mubr.bf16.gmra.mxu0 %v333
        %v496 = vpop.f32.mrf.mxu0
        %v497 = vadd.f32 %v260, %v496
        %v498 = vpop.f32.mrf.mxu0
        %v499 = vpop.f32.mrf.mxu0
        %v500 = vadd.f32 %v260, %v499
        %v501 = vpop.f32.mrf.mxu0
        %502 = vmatprep.mubr.bf16.mxu0 0
        %503 = vmatmul.mubr.bf16.gmra.mxu0 %v334
        %v504 = vpop.f32.mrf.mxu0
        %v505 = vadd.f32 %v260, %v504
        %v506 = vpop.f32.mrf.mxu0
        %v507 = vpop.f32.mrf.mxu0
        %v508 = vadd.f32 %v260, %v507
        %v509 = vpop.f32.mrf.mxu0
        %510 = vmatprep.mubr.bf16.mxu0 0
        %511 = vmatmul.mubr.bf16.gmra.mxu0 %v335
        %v512 = vpop.f32.mrf.mxu0
        %v513 = vadd.f32 %v260, %v512
        %v514 = vpop.f32.mrf.mxu0
        %v515 = vpop.f32.mrf.mxu0
        %v516 = vadd.f32 %v260, %v515
        %v517 = vpop.f32.mrf.mxu0
        %518 = vmatprep.mubr.bf16.mxu0 0
        %519 = vmatmul.mubr.bf16.gmra.mxu0 %v336
        %v520 = vpop.f32.mrf.mxu0
        %v521 = vadd.f32 %v260, %v520
        %v522 = vpop.f32.mrf.mxu0
        %v523 = vpop.f32.mrf.mxu0
        %v524 = vadd.f32 %v260, %v523
        %v525 = vpop.f32.mrf.mxu0
        %526 = vmatprep.mubr.bf16.mxu0 0
        %527 = vmatmul.mubr.bf16.gmra.mxu0 %v337
        %v528 = vpop.f32.mrf.mxu0
        %v529 = vadd.f32 %v260, %v528
        %v530 = vpop.f32.mrf.mxu0
        %v531 = vpop.f32.mrf.mxu0
        %v532 = vadd.f32 %v260, %v531
        %v533 = vpop.f32.mrf.mxu0
        %534 = vmatprep.mubr.bf16.mxu0 0
        %535 = vmatmul.mubr.bf16.gmra.mxu0 %v338
        %v536 = vpop.f32.mrf.mxu0
        %v537 = vadd.f32 %v260, %v536
        %v538 = vpop.f32.mrf.mxu0
        %v539 = vpop.f32.mrf.mxu0
        %v540 = vadd.f32 %v260, %v539
        %v541 = vpop.f32.mrf.mxu0
        %542 = vmatprep.mubr.bf16.mxu0 0
        %543 = vmatmul.mubr.bf16.gmra.mxu0 %v339
        %v544 = vpop.f32.mrf.mxu0
        %v545 = vadd.f32 %v260, %v544
        %v546 = vpop.f32.mrf.mxu0
        %v547 = vpop.f32.mrf.mxu0
        %v548 = vadd.f32 %v260, %v547
        %v549 = vpop.f32.mrf.mxu0
        %550 = vmatprep.mubr.bf16.mxu0 0
        %551 = vmatmul.mubr.bf16.gmra.mxu0 %v340
        %v552 = vpop.f32.mrf.mxu0
        %v553 = vadd.f32 %v260, %v552
        %v554 = vpop.f32.mrf.mxu0
        %v555 = vpop.f32.mrf.mxu0
        %v556 = vadd.f32 %v260, %v555
        %v557 = vpop.f32.mrf.mxu0
        %558 = vmatprep.mubr.bf16.mxu0 0
        %559 = vmatmul.mubr.bf16.gmra.mxu0 %v341
        %v560 = vpop.f32.mrf.mxu0
        %v561 = vadd.f32 %v260, %v560
        %v562 = vpop.f32.mrf.mxu0
        %v563 = vpop.f32.mrf.mxu0
        %v564 = vadd.f32 %v260, %v563
        %v565 = vpop.f32.mrf.mxu0
        %566 = vdwg.mxu0
        %v567 = vpack.c.bf16 %v444, %v441
        %v568 = vpack.c.bf16 %v452, %v449
        %v569 = vpack.c.bf16 %v460, %v457
        %v570 = vpack.c.bf16 %v468, %v465
        %v571 = vpack.c.bf16 %v476, %v473
        %v572 = vpack.c.bf16 %v484, %v481
        %v573 = vpack.c.bf16 %v492, %v489
        %v574 = vpack.c.bf16 %v500, %v497
        %v575 = vpack.c.bf16 %v508, %v505
        %v576 = vpack.c.bf16 %v516, %v513
        %v577 = vpack.c.bf16 %v524, %v521
        %v578 = vpack.c.bf16 %v532, %v529
        %v579 = vpack.c.bf16 %v540, %v537
        %v580 = vpack.c.bf16 %v548, %v545
        %v581 = vpack.c.bf16 %v556, %v553
        %v582 = vpack.c.bf16 %v564, %v561
        %v599 = vunpack.c.l.b16 %v567
        %v600 = vunpack.c.h.b16 %v567
        %v601 = vunpack.c.l.b16 %v568
        %v602 = vunpack.c.h.b16 %v568
        %v603 = vunpack.c.l.b16 %v569
        %v604 = vunpack.c.h.b16 %v569
        %v605 = vunpack.c.l.b16 %v570
        %v606 = vunpack.c.h.b16 %v570
        %v607 = vunpack.c.l.b16 %v571
        %v608 = vunpack.c.h.b16 %v571
        %v609 = vunpack.c.l.b16 %v572
        %v610 = vunpack.c.h.b16 %v572
        %v611 = vunpack.c.l.b16 %v573
        %v612 = vunpack.c.h.b16 %v573
        %v613 = vunpack.c.l.b16 %v574
        %v614 = vunpack.c.h.b16 %v574
        %v615 = vunpack.c.l.b16 %v575
        %v616 = vunpack.c.h.b16 %v575
        %v617 = vunpack.c.l.b16 %v576
        %v618 = vunpack.c.h.b16 %v576
        %v619 = vunpack.c.l.b16 %v577
        %v620 = vunpack.c.h.b16 %v577
        %v621 = vunpack.c.l.b16 %v578
        %v622 = vunpack.c.h.b16 %v578
        %v623 = vunpack.c.l.b16 %v579
        %v624 = vunpack.c.h.b16 %v579
        %v625 = vunpack.c.l.b16 %v580
        %v626 = vunpack.c.h.b16 %v580
        %v627 = vunpack.c.l.b16 %v581
        %v628 = vunpack.c.h.b16 %v581
        %v629 = vunpack.c.l.b16 %v582
        %v630 = vunpack.c.h.b16 %v582
        %v631 = vpack.c.b16 %v599, %v599
        %v632 = vpack.c.b16 %v600, %v600
        %v633 = vpack.c.b16 %v601, %v601
        %v634 = vpack.c.b16 %v602, %v602
        %v635 = vpack.c.b16 %v603, %v603
        %v636 = vpack.c.b16 %v604, %v604
        %v637 = vpack.c.b16 %v605, %v605
        %v638 = vpack.c.b16 %v606, %v606
        %v639 = vpack.c.b16 %v607, %v607
        %v640 = vpack.c.b16 %v608, %v608
        %v641 = vpack.c.b16 %v609, %v609
        %v642 = vpack.c.b16 %v610, %v610
        %v643 = vpack.c.b16 %v611, %v611
        %v644 = vpack.c.b16 %v612, %v612
        %v645 = vpack.c.b16 %v613, %v613
        %v646 = vpack.c.b16 %v614, %v614
        %v647 = vpack.c.b16 %v615, %v615
        %v648 = vpack.c.b16 %v616, %v616
        %v649 = vpack.c.b16 %v617, %v617
        %v650 = vpack.c.b16 %v618, %v618
        %v651 = vpack.c.b16 %v619, %v619
        %v652 = vpack.c.b16 %v620, %v620
        %v653 = vpack.c.b16 %v621, %v621
        %v654 = vpack.c.b16 %v622, %v622
        %v655 = vpack.c.b16 %v623, %v623
        %v656 = vpack.c.b16 %v624, %v624
        %v657 = vpack.c.b16 %v625, %v625
        %v658 = vpack.c.b16 %v626, %v626
        %v659 = vpack.c.b16 %v627, %v627
        %v660 = vpack.c.b16 %v628, %v628
        %v661 = vpack.c.b16 %v629, %v629
        %v662 = vpack.c.b16 %v630, %v630
        %695 = vst [vmem:[%s203] sm:$0xf] %v631
        %696 = vst [vmem:[%s203 + $0x4] sm:$0xf] %v632
        %697 = vst [vmem:[%s203 + $0x8] sm:$0xf] %v633
        %698 = vst [vmem:[%s203 + $0xc] sm:$0xf] %v634
        %699 = vst [vmem:[%s203 + $0x10] sm:$0xf] %v635
        %700 = vst [vmem:[%s203 + $0x14] sm:$0xf] %v636
        %701 = vst [vmem:[%s203 + $0x18] sm:$0xf] %v637
        %702 = vst [vmem:[%s203 + $0x1c] sm:$0xf] %v638
        %703 = vst [vmem:[%s203 + $0x20] sm:$0xf] %v639
        %704 = vst [vmem:[%s203 + $0x24] sm:$0xf] %v640
        %705 = vst [vmem:[%s203 + $0x28] sm:$0xf] %v641
        %706 = vst [vmem:[%s203 + $0x2c] sm:$0xf] %v642
        %707 = vst [vmem:[%s203 + $0x30] sm:$0xf] %v643
        %708 = vst [vmem:[%s203 + $0x34] sm:$0xf] %v644
        %709 = vst [vmem:[%s203 + $0x38] sm:$0xf] %v645
        %710 = vst [vmem:[%s203 + $0x3c] sm:$0xf] %v646
        %711 = vst [vmem:[%s203 + $0x40] sm:$0xf] %v647
        %712 = vst [vmem:[%s203 + $0x44] sm:$0xf] %v648
        %713 = vst [vmem:[%s203 + $0x48] sm:$0xf] %v649
        %714 = vst [vmem:[%s203 + $0x4c] sm:$0xf] %v650
        %715 = vst [vmem:[%s203 + $0x50] sm:$0xf] %v651
        %716 = vst [vmem:[%s203 + $0x54] sm:$0xf] %v652
        %717 = vst [vmem:[%s203 + $0x58] sm:$0xf] %v653
        %718 = vst [vmem:[%s203 + $0x5c] sm:$0xf] %v654
        %719 = vst [vmem:[%s203 + $0x60] sm:$0xf] %v655
        %720 = vst [vmem:[%s203 + $0x64] sm:$0xf] %v656
        %721 = vst [vmem:[%s203 + $0x68] sm:$0xf] %v657
        %722 = vst [vmem:[%s203 + $0x6c] sm:$0xf] %v658
        %723 = vst [vmem:[%s203 + $0x70] sm:$0xf] %v659
        %724 = vst [vmem:[%s203 + $0x74] sm:$0xf] %v660
        %725 = vst [vmem:[%s203 + $0x78] sm:$0xf] %v661
        %726 = vst [vmem:[%s203 + $0x7c] sm:$0xf] %v662
        %s727 = sand.u32 %s97, 1
        %s728 = scalar_lea.sflag [#allocation4], %s727
        %s729 = sand.u32 %s97, 1
        %s730 = smul.addr %s729, 128
        %s731 = scalar_lea.vmem [#allocation7], %s730
        // Predicated region
        $region41: #{tpu_custom_call.1} parent=31 // pred_check
          %p732 = pneg %p107
        $region42: #{tpu_custom_call.1} parent=31 // pred_check_branch
          %734 = sbr.rel (%p732) target = $region44
        $region43: #{tpu_custom_call.1} parent=31 // pred_region
          %s735 = smul.u32 32, %s21
          %s737 = ssub.s32 2048, 2048
          %738 = vsyncadd %s728, %s737
          %s739 = smul.addr %s735, 64
          %s740 = scalar_lea.hbm %s3, %s739
          %s741 = sshll.u32 %s731, 4
          %s742 = int_to_ptr.vmem [resolvable:$true] %s741
          %747 = dma.vmem_to_hbm [thread:$0]  %s742, 2048, %s740, %s728, 64, 64, 4
        $region44: #{tpu_custom_call.1} parent=31 // pred_fallthru
          _
      $region32: #{tpu_custom_call.1} parent=5 // pred_fallthru
        _
      %p748 = scmp.le.s32.totalorder 2, %s16
      // Predicated region
      $region45: #{tpu_custom_call.1} parent=5 // pred_check
        %p749 = pneg %p748
      $region46: #{tpu_custom_call.1} parent=5 // pred_check_branch
        %751 = sbr.rel (%p749) target = $region48
      $region47: #{tpu_custom_call.1} parent=5 // pred_region
        %s752 = ssub.s32 %s16, 2
        // Predicated region
        $region49: #{tpu_custom_call.1} parent=47 // pred_check
          %p753 = pneg %p113
        $region50: #{tpu_custom_call.1} parent=47 // pred_check_branch
          %755 = sbr.rel (%p753) target = $region52
        $region51: #{tpu_custom_call.1} parent=47 // pred_region
          %s756 = sand.u32 %s98, 1
          %s757 = scalar_lea.sflag [#allocation4], %s756
          %s758 = sand.u32 %s98, 1
          %s759 = smul.addr %s758, 128
          %s760 = scalar_lea.vmem [#allocation7], %s759
          %761 = dma.done %s757, 2048
        $region52: #{tpu_custom_call.1} parent=47 // pred_fallthru
          _
      $region48: #{tpu_custom_call.1} parent=5 // pred_fallthru
        _
    $region6: #{tpu_custom_call.1} parent=1 // loop_footer
      %s20 = sadd.s32 1, %s16
    $region7: #{tpu_custom_call.1} parent=1 // loop_footer_branch
      %15 = sbr.rel target = $region3
    $region8: #{tpu_custom_call.1} parent=1 // loop_exit
      _
    %762 = vsyncpa [#allocation3], 1
    %s763 = scalar_lea.sflag [#allocation3], 1
    %764 = vsyncpa %s763, 1
    %765 = vsyncpa [#allocation6], 1
    %766 = vsyncpa [#allocation4], 1
    %s767 = scalar_lea.sflag [#allocation4], 1
    %768 = vsyncpa %s767, 1

</llo_original>
